<compile_context>
chip_gen: v7x
topology: tpu7x:2x2x1
jax: 0.10.0
libtpu: 0.0.40
codegen_flags: <defaults>
</compile_context>

<pallas_src>
import jax
import jax.numpy as jnp
from jax.experimental import pallas as pl
from jax.experimental.pallas import tpu as pltpu

_VMEM_LIMIT = 48 * 1024 * 1024   # safe on v5e/v6e (128 MiB VMEM) and v7x (64 MiB)


def _pick_tile(extent, preferred):
    for t in preferred:
        if extent % t == 0:
            return t
    return extent   # small / odd extent -> single full block (allowed by Pallas)


# ---------------- Pallas kernels (hot path) ----------------

def _conv_mm_kernel(w_ref, b_ref, p_ref, o_ref):
    # (Co, K) @ (K, TM) on the MXU, f32 accumulation; bias folded in epilogue.
    acc = jnp.dot(w_ref[...], p_ref[...], preferred_element_type=jnp.float32)
    o_ref[...] = (acc + b_ref[...]).astype(o_ref.dtype)


def _avgpool_mm_kernel(x_ref, p_ref, o_ref):
    # (TR, 2W) @ (2W, Wh): both 2x2 pooling reductions in a single MXU pass.
    o_ref[...] = jnp.dot(x_ref[...], p_ref[...],
                         preferred_element_type=jnp.float32).astype(o_ref.dtype)


# ---------------- wrappers ----------------

def downsample_with_conv(x, w, b, *, compute_dtype=jnp.bfloat16):
    """Downsample.forward with with_conv=True.

    x: (B, C, H, W) f32, w: (Co, C, 3, 3), b: (Co,)
    PyTorch: F.pad(x, (0,1,0,1)) then Conv2d(k=3, stride=2, padding=0).
    """
    B, C, H, Wd = x.shape
    Co = w.shape[0]
    xp = jnp.pad(x, ((0, 0), (0, 0), (0, 1), (0, 1)))        # pad right/bottom by 1
    Hp, Wp = H + 1, Wd + 1
    Ho, Wo = (Hp - 3) // 2 + 1, (Wp - 3) // 2 + 1
    Mo = Ho * Wo
    K = C * 9

    # im2col with K ordered as (c, kh, kw) so only a reshape (no transpose) is
    # needed, and lanes = spatial output positions.
    # TODO(synk): fuse this tap gather into the kernel DMA (stride-2 pl.ds loads
    # over the padded input) to remove the remaining im2col HBM round trip.
    cols = [xp[:, :, kh:kh + 2 * Ho:2, kw:kw + 2 * Wo:2]
            for kh in range(3) for kw in range(3)]
    patches = jnp.stack(cols, axis=2).reshape(B, K, Mo).astype(compute_dtype)

    w_mat = w.reshape(Co, K).astype(compute_dtype)            # k = c*9 + kh*3 + kw
    b_col = b.reshape(Co, 1).astype(jnp.float32)

    TM = _pick_tile(Mo, (512, 1024, 256, 128))                # lane tile of Ho*Wo
    grid = (B, Mo // TM)

    out = pl.pallas_call(
        _conv_mm_kernel,
        out_shape=jax.ShapeDtypeStruct((B, Co, Mo), jnp.float32),
        grid=grid,
        in_specs=[
            pl.BlockSpec((Co, K), lambda bi, mi: (0, 0)),     # VMEM-resident weights
            pl.BlockSpec((Co, 1), lambda bi, mi: (0, 0)),     # VMEM-resident bias
            pl.BlockSpec((None, K, TM), lambda bi, mi: (bi, 0, mi)),
        ],
        out_specs=pl.BlockSpec((None, Co, TM), lambda bi, mi: (bi, 0, mi)),
        compiler_params=pltpu.CompilerParams(
            dimension_semantics=("parallel", "parallel"),
            vmem_limit_bytes=_VMEM_LIMIT),
    )(w_mat, b_col, patches)

    return out.reshape(B, Co, Ho, Wo)        # free reshape, already NCHW


def downsample_no_conv(x):
    """Downsample.forward with with_conv=False: avg_pool2d(k=2, s=2)."""
    B, C, H, Wd = x.shape
    Hh, Wh = H // 2, Wd // 2
    R = B * C * Hh
    W2 = 2 * Wd

    xv = x.reshape(R, W2)                    # free reshape: [input row0 | row1]
    rows = jnp.arange(W2)
    pool = jnp.zeros((W2, Wh), jnp.float32).at[rows, (rows % Wd) // 2].set(0.25)

    TR = _pick_tile(R, (512, 256, 128, 64, 32, 16, 8))
    grid = (R // TR,)

    out = pl.pallas_call(
        _avgpool_mm_kernel,
        out_shape=jax.ShapeDtypeStruct((R, Wh), jnp.float32),
        grid=grid,
        in_specs=[
            pl.BlockSpec((TR, W2), lambda i: (i, 0)),
            pl.BlockSpec((W2, Wh), lambda i: (0, 0)),         # VMEM-resident pool matrix
        ],
        out_specs=pl.BlockSpec((TR, Wh), lambda i: (i, 0)),
        compiler_params=pltpu.CompilerParams(
            dimension_semantics=("parallel",),
            vmem_limit_bytes=_VMEM_LIMIT),
    )(xv, pool)

    return out.reshape(B, C, Hh, Wh)


# ---------------- demo / correctness check ----------------

if __name__ == "__main__":
    key = jax.random.PRNGKey(0)
    kx, kw, kb = jax.random.split(key, 3)

    B, C, H, W = 2, 4, 16, 16
    x = jax.random.normal(kx, (B, C, H, W), dtype=jnp.float32)
    w = jax.random.normal(kw, (C, C, 3, 3), dtype=jnp.float32) * 0.1
    b = jax.random.normal(kb, (C,), dtype=jnp.float32) * 0.1

    y_conv = jax.block_until_ready(downsample_with_conv(x, w, b))
    y_pool = jax.block_until_ready(downsample_no_conv(x))

    # References (exact PyTorch semantics).  The conv reference uses the same
    # bf16 input rounding as the kernel, with f32 accumulation.
    xp = jnp.pad(x, ((0, 0), (0, 0), (0, 1), (0, 1)))
    xr = xp.astype(jnp.bfloat16).astype(jnp.float32)
    wr = w.astype(jnp.bfloat16).astype(jnp.float32)
    ref_conv = jax.lax.conv_general_dilated(
        xr, wr, window_strides=(2, 2), padding="VALID",
        dimension_numbers=("NCHW", "OIHW", "NCHW"),
        precision=jax.lax.Precision.HIGHEST) + b.reshape(1, -1, 1, 1)
    ref_pool = x.reshape(B, C, H // 2, 2, W // 2, 2).mean(axis=(3, 5))

    assert y_conv.shape == (B, C, H // 2, W // 2)
    assert y_pool.shape == (B, C, H // 2, W // 2)
    assert jnp.allclose(y_conv, ref_conv, atol=1e-3, rtol=1e-3)
    assert jnp.allclose(y_pool, ref_pool, atol=1e-4, rtol=1e-4)

    print("KERNEL_OK")
</pallas_src>

<mosaic_0001>
module attributes {stable_mosaic.version = 11 : i64} {
  func.func @_conv_mm_kernel(%arg0: i32, %arg1: i32, %arg2: memref<4x36xbf16, #tpu.memory_space<vmem>>, %arg3: memref<4x1xf32, #tpu.memory_space<vmem>>, %arg4: memref<1x36x64xbf16, #tpu.memory_space<vmem>>, %arg5: memref<1x4x64xf32, #tpu.memory_space<vmem>>) attributes {dimension_semantics = [#tpu.dimension_semantics<parallel>, #tpu.dimension_semantics<parallel>], iteration_bounds = array<i64: 2, 1>, scalar_prefetch = 0 : i64, scratch_operands = 0 : i64, tpu.core_type = #tpu.core_type<tc>, window_params = [{pipeline_mode = #tpu.pipeline_mode<synchronous>, transform_indices = @transform_0, window_bounds = array<i64: 4, 36>}, {pipeline_mode = #tpu.pipeline_mode<synchronous>, transform_indices = @transform_1, window_bounds = array<i64: 4, 1>}, {transform_indices = @transform_2, window_bounds = array<i64: 1, 36, 64>}, {transform_indices = @transform_3, window_bounds = array<i64: 1, 4, 64>}]} {
    %c0 = arith.constant 0 : index
    %c0_0 = arith.constant 0 : index
    %0 = vector.load %arg2[%c0, %c0_0] : memref<4x36xbf16, #tpu.memory_space<vmem>>, vector<4x36xbf16>
    %c0_1 = arith.constant 0 : index
    %c0_2 = arith.constant 0 : index
    %c0_3 = arith.constant 0 : index
    %1 = vector.load %arg4[%c0_1, %c0_2, %c0_3] : memref<1x36x64xbf16, #tpu.memory_space<vmem>>, vector<1x36x64xbf16>
    %2 = vector.shape_cast %1 : vector<1x36x64xbf16> to vector<36x64xbf16>
    %cst = arith.constant dense<0.000000e+00> : vector<4x64xf32>
    %3 = tpu.matmul %0, %2, %cst {dimension_numbers = #tpu.dot_dimension_numbers<[1], [0], [0], [1], [0, 0, 1, 1], [], []>} : vector<4x36xbf16>, vector<36x64xbf16>, vector<4x64xf32> -> vector<4x64xf32>
    %c0_4 = arith.constant 0 : index
    %c0_5 = arith.constant 0 : index
    %4 = vector.load %arg3[%c0_4, %c0_5] : memref<4x1xf32, #tpu.memory_space<vmem>>, vector<4x1xf32>
    %5 = vector.broadcast %4 : vector<4x1xf32> to vector<4x64xf32>
    %6 = arith.addf %3, %5 : vector<4x64xf32>
    %c0_6 = arith.constant 0 : index
    %c0_7 = arith.constant 0 : index
    %c0_8 = arith.constant 0 : index
    %7 = vector.load %arg5[%c0_6, %c0_7, %c0_8] : memref<1x4x64xf32, #tpu.memory_space<vmem>>, vector<1x4x64xf32>
    %8 = vector.shape_cast %7 : vector<1x4x64xf32> to vector<4x64xf32>
    %9 = vector.shape_cast %6 : vector<4x64xf32> to vector<1x4x64xf32>
    tpu.vector_store %arg5[%c0_6, %c0_7, %c0_8], %9 {strides = array<i32>} : memref<1x4x64xf32, #tpu.memory_space<vmem>>, vector<1x4x64xf32>,
    return
  }
  func.func @transform_0(%arg0: i32, %arg1: i32) -> (i32, i32) {
    %c0_i32 = arith.constant 0 : i32
    %c0_i32_0 = arith.constant 0 : i32
    %c0_i32_1 = arith.constant 0 : i32
    return %c0_i32, %c0_i32_0 : i32, i32
  }
  func.func @transform_1(%arg0: i32, %arg1: i32) -> (i32, i32) {
    %c0_i32 = arith.constant 0 : i32
    %c0_i32_0 = arith.constant 0 : i32
    %c0_i32_1 = arith.constant 0 : i32
    return %c0_i32, %c0_i32_0 : i32, i32
  }
  func.func @transform_2(%arg0: i32, %arg1: i32) -> (i32, i32, i32) {
    %c0_i32 = arith.constant 0 : i32
    %c0_i32_0 = arith.constant 0 : i32
    return %arg0, %c0_i32, %arg1 : i32, i32, i32
  }
  func.func @transform_3(%arg0: i32, %arg1: i32) -> (i32, i32, i32) {
    %c0_i32 = arith.constant 0 : i32
    %c0_i32_0 = arith.constant 0 : i32
    return %arg0, %c0_i32, %arg1 : i32, i32, i32
  }
}

</mosaic_0001>

<llo_original>
// kernel: tpu_custom_call.1
$region0: #{tpu_custom_call.1}
  #allocation0 [shape = 'u32[]', space=smem, size = 0x4, offset = 0x4, fixed_abs, tag = 'smem constant byte address 0x4 - core index']
  #allocation1 [shape = 'u32[144,128]{1,0:T(1,128)}', space=vmem, size = 0x12000, scoped, tag = 'internal scratch']
  %s0 = inlined_call_operand.vmem [shape: bf16[4,36], index: 0, kind: input, shape index: {}]
  %s1 = inlined_call_operand.vmem [shape: f32[4,1], index: 1, kind: input, shape index: {}]
  %s2 = inlined_call_operand.vmem [shape: bf16[2,36,64], index: 2, kind: input, shape index: {}]
  %s3 = inlined_call_operand.hbm [shape: f32[2,4,64], index: 3, kind: output, shape index: {}]
  %s4 = sld [smem:[#allocation0]]
  $region45: #{tpu_custom_call.1} parent=0
    _
  %s6 = ssub.s32 1, %s4
  %s7 = scalar_select 0, %s6, %s4
  $region1: #{tpu_custom_call.1} parent=0
    #allocation2 [shape = 'u8[4096]{0}', space=vmem, size = 0x1000, scoped, tag = 'output window, operand 0']
    #allocation3 [shape = 's32[2]{0}', space=sflag, size = 0x8, scoped, tag = 'scoped memory for tpu_custom_call.1']
    %8 = vsyncpa [#allocation3], 0
    %s9 = scalar_lea.sflag [#allocation3], 1
    %10 = vsyncpa %s9, 0
    loop: start=0, step=1, limit=4
    $region2: #{tpu_custom_call.1} parent=1 // loop_pre_header
      _
    $region3: #{tpu_custom_call.1} parent=1 // loop_header
      %s12 = sphi 0, %s16
      %p13 = scmp.ge.s32.totalorder %s12, 4
      %s19 = sphi 0, %s31
      %s20 = sphi 0, %s27
      %s21 = sphi 0, %s19
      %s22 = sphi 0, %s20
      %s23 = sphi 0, %s21
      %s24 = sphi 0, %s22
      %s32 = sphi 0, %s32
      %s34 = sphi 0, %s32
      %s35 = sphi 0, %s34
      %s49 = sphi 0, %s35
      %s53 = sphi 0, %s53
      %s55 = sphi 0, %s53
      %s56 = sphi 0, %s55
      %s70 = sphi 0, %s56
      %s78 = sphi 0, %s80
      %s81 = sphi 0, %s78
      %s82 = sphi 0, %s81
      %s98 = sphi 0, %s82
      %s106 = sphi 0, %s108
      %s109 = sphi 0, %s106
      %s110 = sphi 0, %s109
      %s126 = sphi 0, %s110
    $region4: #{tpu_custom_call.1} parent=1 // loop_header_branch
      %15 = sbr.rel (%p13) target = $region8
    $region5: #{tpu_custom_call.1} parent=1 // loop_body
      %s17 = ssub.s32 %s12, 1
      %s18 = ssub.s32 %s12, 2
      %s25 = sadd.s32 1, %s20
      %p26 = scmp.ge.s32.totalorder %s25, 1
      %s27 = scalar_select %p26, 0, %s25
      %s28 = sadd.s32 1, %s19
      %s29 = scalar_select %p26, %s28, %s19
      %p30 = scmp.ge.s32.totalorder %s29, 2
      %s31 = scalar_select %p30, 0, %s29
      %s33 = sadd.s32 %s32, 1
      %p36 = scmp.eq.s32.totalorder %s12, 1
      %p37 = scmp.ne.s32.totalorder %s32, %s34
      %p38 = scmp.eq.s32.totalorder %s12, 0
      %p39 = por %p37, %p38
      %p40 = scmp.ne.s32.totalorder %s32, %s34
      %p41 = scmp.eq.s32.totalorder %s17, 1
      %p42 = por %p40, %p41
      %p43 = scmp.ne.s32.totalorder %s34, %s35
      %p44 = scmp.eq.s32.totalorder %s17, 0
      %p45 = por %p43, %p44
      %p46 = scmp.ne.s32.totalorder %s34, %s35
      %p47 = scmp.eq.s32.totalorder %s18, 1
      %p48 = por %p46, %p47
      %p50 = scmp.ne.s32.totalorder %s35, %s49
      %p51 = scmp.eq.s32.totalorder %s18, 0
      %p52 = por %p50, %p51
      %s54 = sadd.s32 %s53, 1
      %p57 = scmp.eq.s32.totalorder %s12, 1
      %p58 = scmp.ne.s32.totalorder %s53, %s55
      %p59 = scmp.eq.s32.totalorder %s12, 0
      %p60 = por %p58, %p59
      %p61 = scmp.ne.s32.totalorder %s53, %s55
      %p62 = scmp.eq.s32.totalorder %s17, 1
      %p63 = por %p61, %p62
      %p64 = scmp.ne.s32.totalorder %s55, %s56
      %p65 = scmp.eq.s32.totalorder %s17, 0
      %p66 = por %p64, %p65
      %p67 = scmp.ne.s32.totalorder %s55, %s56
      %p68 = scmp.eq.s32.totalorder %s18, 1
      %p69 = por %p67, %p68
      %p71 = scmp.ne.s32.totalorder %s56, %s70
      %p72 = scmp.eq.s32.totalorder %s18, 0
      %p73 = por %p71, %p72
      %s74 = ssub.s32 %s19, %s31
      %s75 = ssub.s32 %s20, %s27
      %s76 = sor.u32 %s74, %s75
      %p77 = scmp.eq.s32.totalorder %s76, 0
      %s79 = sadd.s32 %s78, 1
      %s80 = scalar_select %p77, %s78, %s79
      %p83 = pneg %p77
      %p84 = scmp.eq.s32.totalorder %s12, 1
      %p85 = por %p83, %p84
      %p86 = scmp.ne.s32.totalorder %s78, %s81
      %p87 = scmp.eq.s32.totalorder %s12, 0
      %p88 = por %p86, %p87
      %p89 = scmp.ne.s32.totalorder %s78, %s81
      %p90 = scmp.eq.s32.totalorder %s17, 1
      %p91 = por %p89, %p90
      %p92 = scmp.ne.s32.totalorder %s81, %s82
      %p93 = scmp.eq.s32.totalorder %s17, 0
      %p94 = por %p92, %p93
      %p95 = scmp.ne.s32.totalorder %s81, %s82
      %p96 = scmp.eq.s32.totalorder %s18, 1
      %p97 = por %p95, %p96
      %p99 = scmp.ne.s32.totalorder %s82, %s98
      %p100 = scmp.eq.s32.totalorder %s18, 0
      %p101 = por %p99, %p100
      %s102 = ssub.s32 %s19, %s31
      %s103 = ssub.s32 %s20, %s27
      %s104 = sor.u32 %s102, %s103
      %p105 = scmp.eq.s32.totalorder %s104, 0
      %s107 = sadd.s32 %s106, 1
      %s108 = scalar_select %p105, %s106, %s107
      %p111 = pneg %p105
      %p112 = scmp.eq.s32.totalorder %s12, 1
      %p113 = por %p111, %p112
      %p114 = scmp.ne.s32.totalorder %s106, %s109
      %p115 = scmp.eq.s32.totalorder %s12, 0
      %p116 = por %p114, %p115
      %p117 = scmp.ne.s32.totalorder %s106, %s109
      %p118 = scmp.eq.s32.totalorder %s17, 1
      %p119 = por %p117, %p118
      %p120 = scmp.ne.s32.totalorder %s109, %s110
      %p121 = scmp.eq.s32.totalorder %s17, 0
      %p122 = por %p120, %p121
      %p123 = scmp.ne.s32.totalorder %s109, %s110
      %p124 = scmp.eq.s32.totalorder %s18, 1
      %p125 = por %p123, %p124
      %p127 = scmp.ne.s32.totalorder %s110, %s126
      %p128 = scmp.eq.s32.totalorder %s18, 0
      %p129 = por %p127, %p128
      %p130 = scmp.le.s32.totalorder 1, %s12
      %p131 = scmp.lt.s32.totalorder %s12, 3
      %p132 = pnand %p130, %p131
      %p133 = pneg %p132
      // Predicated region
      $region9: #{tpu_custom_call.1} parent=5 // pred_check
        _
      $region10: #{tpu_custom_call.1} parent=5 // pred_check_branch
        %135 = sbr.rel (%p132) target = $region12
      $region11: #{tpu_custom_call.1} parent=5 // pred_region
        %s136 = ssub.s32 %s12, 1
        // Predicated region
        $region13: #{tpu_custom_call.1} parent=11 // pred_check
          %p137 = pneg %p45
        $region14: #{tpu_custom_call.1} parent=11 // pred_check_branch
          %139 = sbr.rel (%p137) target = $region16
        $region15: #{tpu_custom_call.1} parent=11 // pred_region
          _
        $region16: #{tpu_custom_call.1} parent=11 // pred_fallthru
          _
        // Predicated region
        $region17: #{tpu_custom_call.1} parent=11 // pred_check
          %p140 = pneg %p66
        $region18: #{tpu_custom_call.1} parent=11 // pred_check_branch
          %142 = sbr.rel (%p140) target = $region20
        $region19: #{tpu_custom_call.1} parent=11 // pred_region
          _
        $region20: #{tpu_custom_call.1} parent=11 // pred_fallthru
          _
      $region12: #{tpu_custom_call.1} parent=5 // pred_fallthru
        _
      %p143 = scmp.lt.s32.totalorder %s12, 2
      // Predicated region
      $region21: #{tpu_custom_call.1} parent=5 // pred_check
        %p144 = pneg %p143
      $region22: #{tpu_custom_call.1} parent=5 // pred_check_branch
        %146 = sbr.rel (%p144) target = $region24
      $region23: #{tpu_custom_call.1} parent=5 // pred_region
        // Predicated region
        $region25: #{tpu_custom_call.1} parent=23 // pred_check
          %p147 = pneg %p88
        $region26: #{tpu_custom_call.1} parent=23 // pred_check_branch
          %149 = sbr.rel (%p147) target = $region28
        $region27: #{tpu_custom_call.1} parent=23 // pred_region
          %p150 = scmp.lt.s32.totalorder %s19, 1
          %s151 = scalar_select %p150, %s19, 1
          %p152 = scmp.lt.s32.totalorder %s20, 0
          %s153 = scalar_select %p152, %s20, 0
          %s154 = smul.addr %s151, 5
          %s155 = sadd.s32 %s153, %s154
          %s156 = smul.addr %s155, 4
          %s157 = scalar_lea.vmem %s2, %s156
        $region28: #{tpu_custom_call.1} parent=23 // pred_fallthru
          _
      $region24: #{tpu_custom_call.1} parent=5 // pred_fallthru
        _
      %p158 = scmp.le.s32.totalorder 1, %s12
      %p159 = scmp.lt.s32.totalorder %s12, 3
      %p160 = pnand %p158, %p159
      %p161 = pneg %p160
      // Predicated region
      $region29: #{tpu_custom_call.1} parent=5 // pred_check
        _
      $region30: #{tpu_custom_call.1} parent=5 // pred_check_branch
        %163 = sbr.rel (%p160) target = $region32
      $region31: #{tpu_custom_call.1} parent=5 // pred_region
        %s164 = ssub.s32 %s12, 1
        %p165 = pneg %p45
        %p166 = pneg %p42
        %p167 = pneg %p66
        %p168 = pneg %p63
        %p169 = scmp.lt.s32.totalorder %s21, 1
        %s170 = scalar_select %p169, %s21, 1
        %p171 = scmp.lt.s32.totalorder %s22, 0
        %s172 = scalar_select %p171, %s22, 0
        %s173 = smul.addr %s170, 5
        %s174 = sadd.s32 %s172, %s173
        %s175 = smul.addr %s174, 4
        %s176 = scalar_lea.vmem %s2, %s175
        %p177 = pneg %p94
        %p178 = pneg %p91
        %p179 = pneg %p122
        %p180 = pneg %p119
        %s181 = sand.u32 %s109, 1
        %s182 = scalar_lea.sflag [#allocation3], %s181
        %s183 = sand.u32 %s109, 1
        %s184 = smul.addr %s183, 4
        %s185 = scalar_lea.vmem [#allocation2], %s184
        %p186 = scmp.lt.s32.totalorder %s21, 1
        %s187 = scalar_select %p186, %s21, 1
        %p188 = scmp.lt.s32.totalorder %s22, 0
        %s189 = scalar_select %p188, %s22, 0
        %s190 = smul.addr %s187, 5
        %s191 = sadd.s32 %s189, %s190
        %s192 = smul.addr %s191, 4
        %s193 = scalar_lea.vmem %s2, %s192
        %v195 = vld [vmem:[%s0] sm:$0x3]
        %v196 = vld [vmem:[%s193] sm:$0xf]
        %v197 = vld [vmem:[%s193 + $0x4] sm:$0xf]
        %v198 = vld [vmem:[%s193 + $0x8] sm:$0xf]
        %v199 = vld [vmem:[%s193 + $0xc] sm:$0xf]
        %v200 = vld [vmem:[%s193 + $0x10] sm:$0x3]
        %v201 = vld [vmem:[%s1] sm:$0xf]
        %203 = vset.pattern.permute.xlu0 0
        %204 = vperm.xlu0 %203, %v201
        %v205 = vpop.permute.xlu0 %204
        %v212 = vunpack.c.l.b16 %v196
        %v213 = vunpack.c.l.b16 %v197
        %v214 = vunpack.c.l.b16 %v198
        %v215 = vunpack.c.l.b16 %v199
        %v216 = vunpack.c.l.b16 %v200
        %v217 = vpack.c.b16 %v213, %v212
        %v218 = vpack.c.b16 %v215, %v214
        %v219 = vpack.c.b16 %v216, %v216
        %vm222 = vcmask 293888
        %v224 = vsel %vm222, %v195, 0
        %vm226 = vcmask 1041408
        %v228 = vsel %vm226, %v219, 0
        %230 = vmatprep.subr.bf16.mxu0 0
        %231 = vmatpush1.bf16.msra.mxu0 %v217
        %232 = vmatprep.subr.bf16.mxu0 0
        %233 = vmatpush1.bf16.msra.mxu0 %v218
        %234 = vmatprep.subr.bf16.mxu0 0
        %235 = vmatpush1.bf16.msra.mxu0 %v228
        %236 = vmatprep.subr.bf16.mxu0 0
        %237 = vmatpush1.bf16.msra.mxu0 0
        %238 = vmatprep.subr.bf16.mxu0 0
        %239 = vmatpush1.bf16.msra.mxu0 0
        %240 = vmatprep.subr.bf16.mxu0 0
        %241 = vmatpush1.bf16.msra.mxu0 0
        %242 = vmatprep.subr.bf16.mxu0 0
        %243 = vmatpush1.bf16.msra.mxu0 0
        %244 = vmatprep.subr.bf16.mxu0 0
        %245 = vmatpush1.bf16.msra.mxu0 0
        %246 = vmatprep.subr.bf16.mxu0 0
        %247 = vmatpush1.bf16.msra.mxu0 0
        %248 = vmatprep.subr.bf16.mxu0 0
        %249 = vmatpush1.bf16.msra.mxu0 0
        %250 = vmatprep.subr.bf16.mxu0 0
        %251 = vmatpush1.bf16.msra.mxu0 0
        %252 = vmatprep.subr.bf16.mxu0 0
        %253 = vmatpush1.bf16.msra.mxu0 0
        %254 = vmatprep.subr.bf16.mxu0 0
        %255 = vmatpush1.bf16.msra.mxu0 0
        %256 = vmatprep.subr.bf16.mxu0 0
        %257 = vmatpush1.bf16.msra.mxu0 0
        %258 = vmatprep.subr.bf16.mxu0 0
        %259 = vmatpush1.bf16.msra.mxu0 0
        %260 = vmatprep.subr.bf16.mxu0 0
        %261 = vmatpush1.bf16.msra.mxu0 0
        %262 = vmatprep.mubr.bf16.mxu0 0
        %263 = vmatmul.mubr.bf16.gmra.mrb[0].mxu0 %v224
        %v264 = vpop.f32.mrb[0].mxu0
        %v265 = vadd.f32 %v205, %v264
        %v266 = vpop.f32.mrb[0].mxu0
        %v267 = vpop.f32.mrb[0].mxu0
        %v268 = vpop.f32.mrb[0].mxu0
        %269 = vdwg.mxu0
        %vm270 = vcmask 519168
        %271 = vst.msk [vmem:[%s185] sm:$0xf] %vm270, %v265
        %s272 = sand.u32 %s109, 1
        %s273 = scalar_lea.sflag [#allocation3], %s272
        %s274 = sand.u32 %s109, 1
        %s275 = smul.addr %s274, 4
        %s276 = scalar_lea.vmem [#allocation2], %s275
        // Predicated region
        $region33: #{tpu_custom_call.1} parent=31 // pred_check
          %p277 = pneg %p119
        $region34: #{tpu_custom_call.1} parent=31 // pred_check_branch
          %279 = sbr.rel (%p277) target = $region36
        $region35: #{tpu_custom_call.1} parent=31 // pred_region
          %s281 = ssub.s32 64, 64
          %282 = vsyncadd %s273, %s281
          %s283 = sadd.s32 %s22, %s21
          %s284 = smul.addr %s283, 64
          %s285 = scalar_lea.hbm %s3, %s284
          %s287 = sshll.u32 %s276, 4
          %s288 = int_to_ptr.vmem [resolvable:$true] %s287
          %290 = dma.vmem_to_hbm [thread:$0]  %s288, 64, %s285, %s273
        $region36: #{tpu_custom_call.1} parent=31 // pred_fallthru
          _
      $region32: #{tpu_custom_call.1} parent=5 // pred_fallthru
        _
      %p291 = scmp.le.s32.totalorder 2, %s12
      // Predicated region
      $region37: #{tpu_custom_call.1} parent=5 // pred_check
        %p292 = pneg %p291
      $region38: #{tpu_custom_call.1} parent=5 // pred_check_branch
        %294 = sbr.rel (%p292) target = $region40
      $region39: #{tpu_custom_call.1} parent=5 // pred_region
        %s295 = ssub.s32 %s12, 2
        // Predicated region
        $region41: #{tpu_custom_call.1} parent=39 // pred_check
          %p296 = pneg %p125
        $region42: #{tpu_custom_call.1} parent=39 // pred_check_branch
          %298 = sbr.rel (%p296) target = $region44
        $region43: #{tpu_custom_call.1} parent=39 // pred_region
          %s299 = sand.u32 %s110, 1
          %s300 = scalar_lea.sflag [#allocation3], %s299
          %s301 = sand.u32 %s110, 1
          %s302 = smul.addr %s301, 4
          %s303 = scalar_lea.vmem [#allocation2], %s302
          %304 = dma.done %s300, 64
        $region44: #{tpu_custom_call.1} parent=39 // pred_fallthru
          _
      $region40: #{tpu_custom_call.1} parent=5 // pred_fallthru
        _
    $region6: #{tpu_custom_call.1} parent=1 // loop_footer
      %s16 = sadd.s32 1, %s12
    $region7: #{tpu_custom_call.1} parent=1 // loop_footer_branch
      %11 = sbr.rel target = $region3
    $region8: #{tpu_custom_call.1} parent=1 // loop_exit
      _
    %305 = vsyncpa [#allocation3], 1
    %s306 = scalar_lea.sflag [#allocation3], 1
    %307 = vsyncpa %s306, 1

</llo_original>
